<compile_context>
chip_gen: v7x
topology: tpu7x:2x2x1
jax: 0.10.0
libtpu: 0.0.40
codegen_flags: <defaults>
</compile_context>

<pallas_src>
import math
from functools import partial

import jax
import jax.numpy as jnp
from jax.experimental import pallas as pl
from jax.experimental.pallas import tpu as pltpu


# Set False for exact softmax division when validating against the f32 reference.
APPROX_RECIPROCAL = True


# ------------------------- generation-aware config -------------------------- #

def _tpu_generation_config():
    """VMEM limit + tile targets derived from the actual TPU generation."""
    mib = 1024 * 1024
    vmem_cap = 64 * mib
    try:
        vmem_cap = int(pltpu.get_tpu_info().vmem_capacity_bytes)
    except Exception:
        pass  # fall back to conservative (v7x-sized) assumptions
    if vmem_cap >= 96 * mib:
        # v5e / v6e: 128 MiB VMEM, lower HBM BW -> large tiles, ~100 MiB limit.
        return dict(vmem_limit=min(vmem_cap - 28 * mib, 100 * mib),
                    tm=512, tn=512, tk=1024, lane_align=128,
                    tail_tm=256, t_att=512)
    # v7x-class: 64 MiB VMEM, ~2x HBM BW -> smaller 256-aligned tiles + headroom.
    return dict(vmem_limit=max(vmem_cap - 12 * mib, 32 * mib),
                tm=256, tn=512, tk=512, lane_align=256,
                tail_tm=128, t_att=256)


CFG = _tpu_generation_config()


# ----------------------------- tiling helpers ------------------------------ #

def _round_up(x, m):
    return ((x + m - 1) // m) * m


def _pick_tile(dim, target, align):
    """Largest multiple of `align` <= target that divides `dim` (dim % align == 0)."""
    assert dim % align == 0
    if dim <= target:
        return dim
    for cand in range((target // align) * align, align - 1, -align):
        if dim % cand == 0:
            return cand
    return align


def _tile_and_pad(dim, target, align):
    """Return (padded_dim, tile). Pads only when the dim must actually be split."""
    if dim <= target:
        return dim, dim                      # single full-extent block: always legal
    dim_p = _round_up(dim, align)
    return dim_p, _pick_tile(dim_p, target, align)


# ----------------------------- Pallas kernels ------------------------------ #

def matmul_bias_kernel(x_ref, w_ref, b_ref, o_ref, acc_ref):
    """Tiled y = x @ W + b with f32 accumulator over the K grid axis."""
    k = pl.program_id(2)

    @pl.when(k == 0)
    def _():
        acc_ref[...] = jnp.zeros_like(acc_ref)

    acc_ref[...] += jnp.dot(x_ref[...], w_ref[...],
                            preferred_element_type=jnp.float32)

    @pl.when(k == pl.num_programs(2) - 1)
    def _():
        o_ref[...] = (acc_ref[...] + b_ref[...].astype(jnp.float32)).astype(o_ref.dtype)


def flash_attention_kernel(q_ref, k_ref, v_ref, o_ref, m_ref, l_ref, acc_ref,
                           *, n_heads, dh, blk, q_base, k_base, v_base):
    """Causal flash attention for one (batch, q-block): all heads per grid step.

    q_ref/k_ref/v_ref are column windows of the fused (B*S, 3D) QKV buffer;
    the 1/sqrt(dh) scale is already folded into the Q projection weights.
    Online-softmax state (running max / sum / accumulator) lives in f32 scratch
    broadcast across each head's dh lanes so the final store is lane-dense.
    """
    qi = pl.program_id(1)
    kv = pl.program_id(2)

    @pl.when(kv == 0)
    def _():
        m_ref[...] = jnp.full_like(m_ref, -1e30)
        l_ref[...] = jnp.zeros_like(l_ref)
        acc_ref[...] = jnp.zeros_like(acc_ref)

    @pl.when(kv <= qi)  # skip fully-masked (upper-triangle) KV tiles entirely
    def _():
        row = qi * blk + jax.lax.broadcasted_iota(jnp.int32, (blk, blk), 0)
        col = kv * blk + jax.lax.broadcasted_iota(jnp.int32, (blk, blk), 1)
        masked = col > row
        neg = jnp.float32(jnp.finfo(jnp.float32).min)
        for h in range(n_heads):                       # static, unrolled
            osl = slice(h * dh, (h + 1) * dh)
            q = q_ref[:, q_base + h * dh:q_base + (h + 1) * dh]
            k = k_ref[:, k_base + h * dh:k_base + (h + 1) * dh]
            v = v_ref[:, v_base + h * dh:v_base + (h + 1) * dh]
            s = jax.lax.dot_general(q, k, (((1,), (1,)), ((), ())),
                                    preferred_element_type=jnp.float32)
            s = jnp.where(masked, neg, s)              # mask before the running max
            m_prev = m_ref[:, osl]                                        # (blk, dh)
            m_new = jnp.maximum(m_prev, jnp.max(s, axis=-1, keepdims=True))
            alpha = jnp.exp(m_prev - m_new)
            p = jnp.exp(s - m_new[:, :1])
            l_ref[:, osl] = alpha * l_ref[:, osl] + jnp.sum(p, axis=-1, keepdims=True)
            acc_ref[:, osl] = alpha * acc_ref[:, osl] + jnp.dot(
                p.astype(v.dtype), v, preferred_element_type=jnp.float32)
            m_ref[:, osl] = m_new

    @pl.when(kv == pl.num_programs(2) - 1)
    def _():
        l = l_ref[...]
        inv = pl.reciprocal(l, approx=True) if APPROX_RECIPROCAL else 1.0 / l
        o_ref[...] = (acc_ref[...] * inv).astype(o_ref.dtype)


def _layernorm_f32(x, g, b, eps=1e-5):
    mu = jnp.mean(x, axis=-1, keepdims=True)
    var = jnp.mean(jnp.square(x - mu), axis=-1, keepdims=True)
    return (x - mu) * jax.lax.rsqrt(var + eps) * g + b


def decoder_tail_kernel(ctx_ref, xin_ref, wo_ref, bo_ref, ln1g_ref, ln1b_ref,
                        w1_ref, b1_ref, w2_ref, b2_ref, ln2g_ref, ln2b_ref,
                        o_ref, h1_ref, acc_ref):
    """Output proj + residual + LN1, then FFN(ReLU) K-tiled over d_ff, + LN2."""
    j = pl.program_id(1)

    @pl.when(j == 0)
    def _():
        x_in = xin_ref[...].astype(jnp.float32)
        attn = jnp.dot(ctx_ref[...], wo_ref[...],
                       preferred_element_type=jnp.float32) + bo_ref[...]
        h1_ref[...] = _layernorm_f32(x_in + attn, ln1g_ref[...], ln1b_ref[...])
        acc_ref[...] = jnp.zeros_like(acc_ref)

    f = jnp.dot(h1_ref[...].astype(w1_ref.dtype), w1_ref[...],
                preferred_element_type=jnp.float32) + b1_ref[...]
    f = jnp.maximum(f, 0.0)
    acc_ref[...] += jnp.dot(f.astype(w2_ref.dtype), w2_ref[...],
                            preferred_element_type=jnp.float32)

    @pl.when(j == pl.num_programs(1) - 1)
    def _():
        o_ref[...] = _layernorm_f32(h1_ref[...] + acc_ref[...] + b2_ref[...],
                                    ln2g_ref[...], ln2b_ref[...]).astype(o_ref.dtype)


# ------------------------------- Wrappers ---------------------------------- #

def matmul_bias(x, w, b, *, out_dtype, tm_target=None, tn_target=None, tk_target=None):
    M, K = x.shape
    K2, N = w.shape
    assert K == K2
    tm_target = tm_target or CFG["tm"]
    tn_target = tn_target or CFG["tn"]
    tk_target = tk_target or CFG["tk"]
    lane = CFG["lane_align"]

    # Pad any dim that must be split to a tileable multiple (never fall back to
    # a giant full-dim tile, e.g. an unpadded 50k-vocab N block).
    Mp, tm = _tile_and_pad(M, tm_target, 8)
    Kp, tk = _tile_and_pad(K, tk_target, 128)
    Np, tn = _tile_and_pad(N, tn_target, lane)
    if (Mp, Kp) != (M, K):
        x = jnp.pad(x, ((0, Mp - M), (0, Kp - K)))
    if (Kp, Np) != (K, N):
        w = jnp.pad(w, ((0, Kp - K), (0, Np - N)))
        b = jnp.pad(b, ((0, 0), (0, Np - N)))

    out = pl.pallas_call(
        matmul_bias_kernel,
        out_shape=jax.ShapeDtypeStruct((Mp, Np), out_dtype),
        grid=(Mp // tm, Np // tn, Kp // tk),
        in_specs=[
            pl.BlockSpec((tm, tk), lambda i, j, k: (i, k)),
            pl.BlockSpec((tk, tn), lambda i, j, k: (k, j)),
            pl.BlockSpec((1, tn), lambda i, j, k: (0, j)),
        ],
        out_specs=pl.BlockSpec((tm, tn), lambda i, j, k: (i, j)),
        scratch_shapes=[pltpu.VMEM((tm, tn), jnp.float32)],
        compiler_params=pltpu.CompilerParams(
            dimension_semantics=("parallel", "parallel", "arbitrary"),
            vmem_limit_bytes=CFG["vmem_limit"]),
    )(x, w, b)
    if (Mp, Np) != (M, N):
        out = out[:M, :N]
    return out


def causal_attention(qkv, B, S, D, n_heads):
    """qkv: fused (B*S, 3D) projection (q|k|v, head-major cols) -> (B*S, D) context."""
    dh = D // n_heads
    assert S % 8 == 0 or B == 1, "seq len must be a multiple of 8 for tiled attention"
    if S <= CFG["t_att"]:
        blk = S
    else:
        assert S % 8 == 0
        blk = _pick_tile(S, CFG["t_att"], 8)
    nq = S // blk

    if D % 128 == 0:
        # Lane-aligned per-tensor column blocks straight out of the fused buffer.
        wblk = D
        q_col, k_col, v_col = 0, 1, 2
        q_base = k_base = v_base = 0
    else:
        # Small models: full-width blocks (always layout-legal); head slicing in-kernel.
        wblk = 3 * D
        q_col = k_col = v_col = 0
        q_base, k_base, v_base = 0, D, 2 * D

    q_spec = pl.BlockSpec((blk, wblk), lambda b, qi, kv: (b * nq + qi, q_col))
    # Clamp the KV block index on fully-masked steps so the pipeline sees an
    # unchanged block index and skips the redundant K/V DMA.
    k_spec = pl.BlockSpec((blk, wblk),
                          lambda b, qi, kv: (b * nq + jnp.minimum(kv, qi), k_col))
    v_spec = pl.BlockSpec((blk, wblk),
                          lambda b, qi, kv: (b * nq + jnp.minimum(kv, qi), v_col))
    out_spec = pl.BlockSpec((blk, D), lambda b, qi, kv: (b * nq + qi, 0))

    return pl.pallas_call(
        partial(flash_attention_kernel, n_heads=n_heads, dh=dh, blk=blk,
                q_base=q_base, k_base=k_base, v_base=v_base),
        out_shape=jax.ShapeDtypeStruct((B * S, D), jnp.bfloat16),
        grid=(B, nq, nq),
        in_specs=[q_spec, k_spec, v_spec],
        out_specs=out_spec,
        scratch_shapes=[pltpu.VMEM((blk, D), jnp.float32),   # running max  (per-head lanes)
                        pltpu.VMEM((blk, D), jnp.float32),   # running sum
                        pltpu.VMEM((blk, D), jnp.float32)],  # accumulator
        compiler_params=pltpu.CompilerParams(
            dimension_semantics=("parallel", "parallel", "arbitrary"),
            vmem_limit_bytes=CFG["vmem_limit"]),
    )(qkv, qkv, qkv)


def decoder_tail(ctx2d, x2d, p):
    M, D = x2d.shape
    d_ff = p["w1"].shape[1]

    Mp, tm = _tile_and_pad(M, CFG["tail_tm"], 8)
    Fp, tf = _tile_and_pad(d_ff, CFG["tk"], 128)

    if Mp != M:
        ctx2d = jnp.pad(ctx2d, ((0, Mp - M), (0, 0)))
        x2d = jnp.pad(x2d, ((0, Mp - M), (0, 0)))
    w1, b1, w2 = p["w1"], p["b1"], p["w2"]
    if Fp != d_ff:
        w1 = jnp.pad(w1, ((0, 0), (0, Fp - d_ff)))
        b1 = jnp.pad(b1, ((0, 0), (0, Fp - d_ff)))
        w2 = jnp.pad(w2, ((0, Fp - d_ff), (0, 0)))

    row = pl.BlockSpec((tm, D), lambda i, j: (i, 0))
    const = lambda shape: pl.BlockSpec(shape, lambda i, j: (0, 0))
    # TODO(synk): single-buffer the constant weight/bias blocks
    # (pipeline_mode=pl.Buffered(1)) to halve their VMEM footprint on v7x once
    # verified end-to-end with the top-level pallas_call pipeline.

    out = pl.pallas_call(
        decoder_tail_kernel,
        out_shape=jax.ShapeDtypeStruct((Mp, D), jnp.bfloat16),
        grid=(Mp // tm, Fp // tf),
        in_specs=[row, row,
                  const((D, D)), const((1, D)), const((1, D)), const((1, D)),
                  pl.BlockSpec((D, tf), lambda i, j: (0, j)),
                  pl.BlockSpec((1, tf), lambda i, j: (0, j)),
                  pl.BlockSpec((tf, D), lambda i, j: (j, 0)),
                  const((1, D)), const((1, D)), const((1, D))],
        out_specs=row,
        scratch_shapes=[pltpu.VMEM((tm, D), jnp.float32),    # h1 (post-LN1, f32)
                        pltpu.VMEM((tm, D), jnp.float32)],   # FFN accumulator
        compiler_params=pltpu.CompilerParams(
            dimension_semantics=("parallel", "arbitrary"),
            vmem_limit_bytes=CFG["vmem_limit"]),
    )(ctx2d, x2d,
      p["wo"], p["bo"], p["ln1_g"], p["ln1_b"],
      w1, b1, w2,
      p["b2"], p["ln2_g"], p["ln2_b"])
    return out[:M] if Mp != M else out


def run_decoder_layer(x, p, n_heads):
    B, S, D = x.shape
    assert D % n_heads == 0
    x2d = x.reshape(B * S, D)
    # Fused Q/K/V projection, batch folded into the matmul M dimension.
    qkv = matmul_bias(x2d, p["wqkv"], p["bqkv"], out_dtype=jnp.bfloat16)
    # Flash attention reads head columns straight from the fused buffer and
    # writes a head-concatenated (B*S, D) context -- no wrapper transposes.
    ctx2d = causal_attention(qkv, B, S, D, n_heads)
    # Output projection + residual + LN1 + d_ff-tiled FFN + residual + LN2.
    y2d = decoder_tail(ctx2d, x2d, p)
    return y2d.reshape(B, S, D)


# --------------------------- Parameter creation ----------------------------- #

def _xavier(key, shape):
    fan_in, fan_out = shape
    limit = math.sqrt(6.0 / (fan_in + fan_out))
    return jax.random.uniform(key, shape, jnp.float32, -limit, limit)


def make_params(key, vocab_size, d_model, n_layers, n_heads, d_ff):
    keys = iter(jax.random.split(key, 2 + n_layers * 6))
    dh = d_model // n_heads
    params = {
        "emb": _xavier(next(keys), (vocab_size, d_model)),                 # f32 table
        "wf": _xavier(next(keys), (d_model, vocab_size)).astype(jnp.bfloat16),
        "bf": jnp.zeros((1, vocab_size), jnp.float32),
        "layers": [],
    }
    for _ in range(n_layers):
        # 1/sqrt(dh) attention scale folded into wq at parameter time.
        wq = _xavier(next(keys), (d_model, d_model)) * (1.0 / math.sqrt(dh))
        wk = _xavier(next(keys), (d_model, d_model))
        wv = _xavier(next(keys), (d_model, d_model))
        layer = {
            "wqkv": jnp.concatenate([wq, wk, wv], axis=1).astype(jnp.bfloat16),
            "bqkv": jnp.zeros((1, 3 * d_model), jnp.float32),
            "wo": _xavier(next(keys), (d_model, d_model)).astype(jnp.bfloat16),
            "bo": jnp.zeros((1, d_model), jnp.float32),
            "ln1_g": jnp.ones((1, d_model), jnp.float32),
            "ln1_b": jnp.zeros((1, d_model), jnp.float32),
            "w1": _xavier(next(keys), (d_model, d_ff)).astype(jnp.bfloat16),
            "b1": jnp.zeros((1, d_ff), jnp.float32),
            "w2": _xavier(next(keys), (d_ff, d_model)).astype(jnp.bfloat16),
            "b2": jnp.zeros((1, d_model), jnp.float32),
            "ln2_g": jnp.ones((1, d_model), jnp.float32),
            "ln2_b": jnp.zeros((1, d_model), jnp.float32),
        }
        params["layers"].append(layer)
    return params


def sinusoidal_pe(max_len, d_model):
    pos = jnp.arange(max_len, dtype=jnp.float32)[:, None]
    div = jnp.exp(jnp.arange(0, d_model, 2, dtype=jnp.float32)
                  * (-math.log(10000.0) / d_model))
    pe = jnp.zeros((max_len, d_model), jnp.float32)
    pe = pe.at[:, 0::2].set(jnp.sin(pos * div))
    pe = pe.at[:, 1::2].set(jnp.cos(pos * div))
    return pe


# ------------------------------ Forward pass -------------------------------- #

def transformer_lm_forward(tokens, params, pe, n_heads):
    B, S = tokens.shape
    d_model = params["emb"].shape[1]
    # TransformerEmbedding: token embedding * sqrt(d_model) + PE (dropout = identity).
    x = params["emb"][tokens] * math.sqrt(d_model) + pe[:S][None, :, :]
    x = x.astype(jnp.bfloat16)
    # Decoder stack (causal mask applied inside the flash attention kernel).
    for layer in params["layers"]:
        x = run_decoder_layer(x, layer, n_heads)
    # Final linear -> logits [B, S, vocab]. Large tm so the (d_model, vocab)
    # weight is re-streamed from HBM as few times as possible.
    x2d = x.reshape(B * S, d_model)
    logits = matmul_bias(x2d, params["wf"], params["bf"],
                         out_dtype=jnp.float32, tm_target=1024)
    return logits.reshape(B, S, params["wf"].shape[1])


# ---------------------------------- Main ------------------------------------ #

if __name__ == "__main__":
    vocab_size = 128
    d_model = 32
    n_layers = 2
    n_heads = 4
    d_ff = 64
    max_seq_len = 64
    batch, seq = 2, 8

    key = jax.random.PRNGKey(0)
    pkey, tkey = jax.random.split(key)
    params = make_params(pkey, vocab_size, d_model, n_layers, n_heads, d_ff)
    pe = sinusoidal_pe(max_seq_len, d_model)

    tokens = jax.random.randint(tkey, (batch, seq), 0, vocab_size, dtype=jnp.int32)

    logits = transformer_lm_forward(tokens, params, pe, n_heads)
    logits = jax.block_until_ready(logits)
    assert logits.shape == (batch, seq, vocab_size)
    assert bool(jnp.all(jnp.isfinite(logits)))
    print("KERNEL_OK")
</pallas_src>

<mosaic_0001>
module attributes {stable_mosaic.version = 11 : i64} {
  func.func @matmul_bias_kernel(%arg0: i32, %arg1: i32, %arg2: i32, %arg3: memref<16x32xbf16, #tpu.memory_space<vmem>>, %arg4: memref<32x96xbf16, #tpu.memory_space<vmem>>, %arg5: memref<1x96xf32, #tpu.memory_space<vmem>>, %arg6: memref<16x96xbf16, #tpu.memory_space<vmem>>, %arg7: memref<16x96xf32, #tpu.memory_space<vmem>>) attributes {dimension_semantics = [#tpu.dimension_semantics<parallel>, #tpu.dimension_semantics<parallel>, #tpu.dimension_semantics<arbitrary>], iteration_bounds = array<i64: 1, 1, 1>, scalar_prefetch = 0 : i64, scratch_operands = 1 : i64, tpu.core_type = #tpu.core_type<tc>, window_params = [{transform_indices = @transform_0, window_bounds = array<i64: 16, 32>}, {transform_indices = @transform_1, window_bounds = array<i64: 32, 96>}, {transform_indices = @transform_2, window_bounds = array<i64: 1, 96>}, {transform_indices = @transform_3, window_bounds = array<i64: 16, 96>}]} {
    %c0_i32 = arith.constant 0 : i32
    %0 = arith.cmpi eq, %arg2, %c0_i32 : i32
    %1 = arith.extui %0 : i1 to i32
    %c0_i32_0 = arith.constant 0 : i32
    %2 = arith.cmpi ne, %1, %c0_i32_0 : i32
    scf.if %2 {
      %cst_10 = arith.constant 0.000000e+00 : f32
      %12 = vector.broadcast %cst_10 : f32 to vector<16x96xf32>
      %c0_11 = arith.constant 0 : index
      %c0_12 = arith.constant 0 : index
      %13 = vector.load %arg7[%c0_11, %c0_12] : memref<16x96xf32, #tpu.memory_space<vmem>>, vector<16x96xf32>
      tpu.vector_store %arg7[%c0_11, %c0_12], %12 {strides = array<i32>} : memref<16x96xf32, #tpu.memory_space<vmem>>, vector<16x96xf32>,
    } else {
    }
    %c0 = arith.constant 0 : index
    %c0_1 = arith.constant 0 : index
    %3 = vector.load %arg7[%c0, %c0_1] : memref<16x96xf32, #tpu.memory_space<vmem>>, vector<16x96xf32>
    %c0_2 = arith.constant 0 : index
    %c0_3 = arith.constant 0 : index
    %4 = vector.load %arg3[%c0_2, %c0_3] : memref<16x32xbf16, #tpu.memory_space<vmem>>, vector<16x32xbf16>
    %c0_4 = arith.constant 0 : index
    %c0_5 = arith.constant 0 : index
    %5 = vector.load %arg4[%c0_4, %c0_5] : memref<32x96xbf16, #tpu.memory_space<vmem>>, vector<32x96xbf16>
    %cst = arith.constant dense<0.000000e+00> : vector<16x96xf32>
    %6 = tpu.matmul %4, %5, %cst {dimension_numbers = #tpu.dot_dimension_numbers<[1], [0], [0], [1], [0, 0, 1, 1], [], []>} : vector<16x32xbf16>, vector<32x96xbf16>, vector<16x96xf32> -> vector<16x96xf32>
    %7 = arith.addf %3, %6 : vector<16x96xf32>
    %c0_6 = arith.constant 0 : index
    %c0_7 = arith.constant 0 : index
    %8 = vector.load %arg7[%c0_6, %c0_7] : memref<16x96xf32, #tpu.memory_space<vmem>>, vector<16x96xf32>
    tpu.vector_store %arg7[%c0_6, %c0_7], %7 {strides = array<i32>} : memref<16x96xf32, #tpu.memory_space<vmem>>, vector<16x96xf32>,
    %c0_i32_8 = arith.constant 0 : i32
    %9 = arith.cmpi eq, %arg2, %c0_i32_8 : i32
    %10 = arith.extui %9 : i1 to i32
    %c0_i32_9 = arith.constant 0 : i32
    %11 = arith.cmpi ne, %10, %c0_i32_9 : i32
    scf.if %11 {
      %c0_10 = arith.constant 0 : index
      %c0_11 = arith.constant 0 : index
      %12 = vector.load %arg7[%c0_10, %c0_11] : memref<16x96xf32, #tpu.memory_space<vmem>>, vector<16x96xf32>
      %c0_12 = arith.constant 0 : index
      %c0_13 = arith.constant 0 : index
      %13 = vector.load %arg5[%c0_12, %c0_13] : memref<1x96xf32, #tpu.memory_space<vmem>>, vector<1x96xf32>
      %14 = vector.broadcast %13 : vector<1x96xf32> to vector<16x96xf32>
      %15 = arith.addf %12, %14 : vector<16x96xf32>
      %16 = arith.truncf %15 : vector<16x96xf32> to vector<16x96xbf16>
      %c0_14 = arith.constant 0 : index
      %c0_15 = arith.constant 0 : index
      %17 = vector.load %arg6[%c0_14, %c0_15] : memref<16x96xbf16, #tpu.memory_space<vmem>>, vector<16x96xbf16>
      tpu.vector_store %arg6[%c0_14, %c0_15], %16 {strides = array<i32>} : memref<16x96xbf16, #tpu.memory_space<vmem>>, vector<16x96xbf16>,
    } else {
    }
    return
  }
  func.func @transform_0(%arg0: i32, %arg1: i32, %arg2: i32) -> (i32, i32) {
    %c0_i32 = arith.constant 0 : i32
    return %arg0, %arg2 : i32, i32
  }
  func.func @transform_1(%arg0: i32, %arg1: i32, %arg2: i32) -> (i32, i32) {
    %c0_i32 = arith.constant 0 : i32
    return %arg2, %arg1 : i32, i32
  }
  func.func @transform_2(%arg0: i32, %arg1: i32, %arg2: i32) -> (i32, i32) {
    %c0_i32 = arith.constant 0 : i32
    %c0_i32_0 = arith.constant 0 : i32
    return %c0_i32, %arg1 : i32, i32
  }
  func.func @transform_3(%arg0: i32, %arg1: i32, %arg2: i32) -> (i32, i32) {
    %c0_i32 = arith.constant 0 : i32
    return %arg0, %arg1 : i32, i32
  }
}

</mosaic_0001>

<llo_original>
// kernel: tpu_custom_call.1
$region0: #{tpu_custom_call.1}
  #allocation0 [shape = 'u32[]', space=smem, size = 0x4, offset = 0x4, fixed_abs, tag = 'smem constant byte address 0x4 - core index']
  #allocation1 [shape = 'u32[144,128]{1,0:T(1,128)}', space=vmem, size = 0x12000, scoped, tag = 'internal scratch']
  #allocation2 [shape = 'f32[16,96]{1,0:T(8,128)}', space=vmem, size = 0x2000, scoped, tag = 'scratch operand']
  %s0 = inlined_call_operand.hbm [shape: bf16[16,32], index: 0, kind: input, shape index: {}]
  %s1 = inlined_call_operand.hbm [shape: bf16[32,96], index: 1, kind: input, shape index: {}]
  %s2 = inlined_call_operand.vmem [shape: f32[1,96], index: 2, kind: input, shape index: {}]
  %s3 = inlined_call_operand.hbm [shape: bf16[16,96], index: 3, kind: output, shape index: {}]
  %s4 = sld [smem:[#allocation0]]
  $region38: #{tpu_custom_call.1} parent=0
    _
  %s6 = ssub.s32 1, %s4
  %s7 = scalar_select 0, %s6, %s4
  $region1: #{tpu_custom_call.1} parent=0
    #allocation3 [shape = 'u8[4096]{0}', space=vmem, size = 0x1000, scoped, tag = 'input window, operand 0, single buffered']
    #allocation4 [shape = 's32[1]{0}', space=sflag, size = 0x4, scoped, tag = 'scoped memory for tpu_custom_call.1']
    #allocation5 [shape = 's32[1]{0}', space=sflag, size = 0x4, scoped, tag = 'scoped memory for tpu_custom_call.1']
    #allocation6 [shape = 'u8[8192]{0}', space=vmem, size = 0x2000, scoped, tag = 'input window, operand 1, single buffered']
    #allocation7 [shape = 's32[1]{0}', space=sflag, size = 0x4, scoped, tag = 'scoped memory for tpu_custom_call.1']
    #allocation8 [shape = 'u8[4096]{0}', space=vmem, size = 0x1000, scoped, tag = 'output window, operand 0, single buffered']
    %8 = vsyncpa [#allocation4], 0
    %9 = vsyncpa [#allocation7], 0
    %10 = vsyncpa [#allocation5], 0
    // Predicated region
    $region2: #{tpu_custom_call.1} parent=1 // pred_check
      _
    $region3: #{tpu_custom_call.1} parent=1 // pred_check_branch
      %12 = sbr.rel (0) target = $region5
    $region4: #{tpu_custom_call.1} parent=1 // pred_region
      %s14 = ssub.s32 128, 128
      %15 = vsyncadd [#allocation4], %s14
      %s16 = sshll.u32 [#allocation3], 4
      %s17 = int_to_ptr.vmem [resolvable:$true] %s16
      %22 = dma.hbm_to_vmem [thread:$0]  %s0, 128, %s17, [#allocation4], 64, 64, 4
    $region5: #{tpu_custom_call.1} parent=1 // pred_fallthru
      _
    // Predicated region
    $region6: #{tpu_custom_call.1} parent=1 // pred_check
      _
    $region7: #{tpu_custom_call.1} parent=1 // pred_check_branch
      %24 = sbr.rel (0) target = $region9
    $region8: #{tpu_custom_call.1} parent=1 // pred_region
      %s26 = ssub.s32 256, 256
      %27 = vsyncadd [#allocation7], %s26
      %s28 = sshll.u32 [#allocation6], 4
      %s29 = int_to_ptr.vmem [resolvable:$true] %s28
      %34 = dma.hbm_to_vmem [thread:$0]  %s1, 256, %s29, [#allocation7], 64, 64, 4
    $region9: #{tpu_custom_call.1} parent=1 // pred_fallthru
      _
    // Predicated region
    $region10: #{tpu_custom_call.1} parent=1 // pred_check
      _
    $region11: #{tpu_custom_call.1} parent=1 // pred_check_branch
      %36 = sbr.rel (0) target = $region13
    $region12: #{tpu_custom_call.1} parent=1 // pred_region
      _
    $region13: #{tpu_custom_call.1} parent=1 // pred_fallthru
      _
    // Predicated region
    $region14: #{tpu_custom_call.1} parent=1 // pred_check
      _
    $region15: #{tpu_custom_call.1} parent=1 // pred_check_branch
      %38 = sbr.rel (0) target = $region17
    $region16: #{tpu_custom_call.1} parent=1 // pred_region
      %39 = dma.done [#allocation4], 128
    $region17: #{tpu_custom_call.1} parent=1 // pred_fallthru
      _
    // Predicated region
    $region18: #{tpu_custom_call.1} parent=1 // pred_check
      _
    $region19: #{tpu_custom_call.1} parent=1 // pred_check_branch
      %41 = sbr.rel (0) target = $region21
    $region20: #{tpu_custom_call.1} parent=1 // pred_region
      %42 = dma.done [#allocation7], 256
    $region21: #{tpu_custom_call.1} parent=1 // pred_fallthru
      _
    %p44 = scmp.eq.s32.totalorder 0, 0
    // Predicated region
    $region22: #{tpu_custom_call.1} parent=1 // pred_check
      %p45 = pneg %p44
    $region23: #{tpu_custom_call.1} parent=1 // pred_check_branch
      %47 = sbr.rel (%p45) target = $region25
    $region24: #{tpu_custom_call.1} parent=1 // pred_region
      %vm48 = vcmask 785408
      %49 = vst.msk [vmem:[#allocation2] sm:$0xff] %vm48, 0.0
      %50 = vst.msk [vmem:[#allocation2 + $0x8] sm:$0xff] %vm48, 0.0
    $region25: #{tpu_custom_call.1} parent=1 // pred_fallthru
      _
    %v51 = vld [vmem:[#allocation2] sm:$0xff]
    %v52 = vld [vmem:[#allocation2 + $0x8] sm:$0xff]
    %v53 = vld [vmem:[#allocation3] sm:$0xf]
    %v54 = vld [vmem:[#allocation3 + $0x4] sm:$0xf]
    %v55 = vld [vmem:[#allocation6] sm:$0xf]
    %v56 = vld [vmem:[#allocation6 + $0x4] sm:$0xf]
    %v57 = vld [vmem:[#allocation6 + $0x8] sm:$0xf]
    %v58 = vld [vmem:[#allocation6 + $0xc] sm:$0xf]
    %v61 = vunpack.c.l.b16 %v53
    %v62 = vunpack.c.l.b16 %v54
    %v63 = vpack.c.b16 %v62, %v61
    %v68 = vunpack.c.l.b16 %v55
    %v69 = vunpack.c.l.b16 %v56
    %v70 = vunpack.c.l.b16 %v57
    %v71 = vunpack.c.l.b16 %v58
    %v72 = vpack.c.b16 %v69, %v68
    %v73 = vpack.c.b16 %v71, %v70
    %vm76 = vcmask 261120
    %v78 = vsel %vm76, %v63, 0
    %80 = vmatprep.subr.bf16.mxu0 0
    %81 = vmatpush1.bf16.msra.mxu0 %v72
    %82 = vmatprep.subr.bf16.mxu0 0
    %83 = vmatpush1.bf16.msra.mxu0 %v73
    %84 = vmatprep.subr.bf16.mxu0 0
    %85 = vmatpush1.bf16.msra.mxu0 0
    %86 = vmatprep.subr.bf16.mxu0 0
    %87 = vmatpush1.bf16.msra.mxu0 0
    %88 = vmatprep.subr.bf16.mxu0 0
    %89 = vmatpush1.bf16.msra.mxu0 0
    %90 = vmatprep.subr.bf16.mxu0 0
    %91 = vmatpush1.bf16.msra.mxu0 0
    %92 = vmatprep.subr.bf16.mxu0 0
    %93 = vmatpush1.bf16.msra.mxu0 0
    %94 = vmatprep.subr.bf16.mxu0 0
    %95 = vmatpush1.bf16.msra.mxu0 0
    %96 = vmatprep.subr.bf16.mxu0 0
    %97 = vmatpush1.bf16.msra.mxu0 0
    %98 = vmatprep.subr.bf16.mxu0 0
    %99 = vmatpush1.bf16.msra.mxu0 0
    %100 = vmatprep.subr.bf16.mxu0 0
    %101 = vmatpush1.bf16.msra.mxu0 0
    %102 = vmatprep.subr.bf16.mxu0 0
    %103 = vmatpush1.bf16.msra.mxu0 0
    %104 = vmatprep.subr.bf16.mxu0 0
    %105 = vmatpush1.bf16.msra.mxu0 0
    %106 = vmatprep.subr.bf16.mxu0 0
    %107 = vmatpush1.bf16.msra.mxu0 0
    %108 = vmatprep.subr.bf16.mxu0 0
    %109 = vmatpush1.bf16.msra.mxu0 0
    %110 = vmatprep.subr.bf16.mxu0 0
    %111 = vmatpush1.bf16.msra.mxu0 0
    %112 = vmatprep.mubr.bf16.mxu0 0
    %113 = vmatmul.mubr.bf16.gmra.mrb[0].mxu0 %v78
    %v114 = vpop.f32.mrb[0].mxu0
    %v115 = vadd.f32 0.0, %v114
    %v116 = vpop.f32.mrb[0].mxu0
    %v117 = vpop.f32.mrb[0].mxu0
    %v118 = vadd.f32 0.0, %v117
    %v119 = vpop.f32.mrb[0].mxu0
    %120 = vdwg.mxu0
    %v121 = vadd.f32 %v51, %v115
    %v122 = vadd.f32 %v52, %v118
    %vm123 = vcmask 785408
    %124 = vst.msk [vmem:[#allocation2] sm:$0xff] %vm123, %v121
    %125 = vst.msk [vmem:[#allocation2 + $0x8] sm:$0xff] %vm123, %v122
    // Predicated region
    $region26: #{tpu_custom_call.1} parent=1 // pred_check
      %p126 = pneg %p44
    $region27: #{tpu_custom_call.1} parent=1 // pred_check_branch
      %128 = sbr.rel (%p126) target = $region29
    $region28: #{tpu_custom_call.1} parent=1 // pred_region
      %v129 = vld [vmem:[#allocation2] sm:$0xff]
      %v130 = vld [vmem:[#allocation2 + $0x8] sm:$0xff]
      %v131 = vld [vmem:[%s2] sm:$0x1]
      %v133 = vlaneseq
      %v134 = vshrl.u32 %v133, 7
      %v135 = vsub.s32 0, %v134
      %v136 = vrot.slane %v131, %v135
      %v138 = vadd.f32 %v129, %v136
      %v139 = vadd.f32 %v130, %v136
      %v140 = vpack.c.bf16 %v139, %v138
      %v142 = vunpack.c.l.b16 %v140
      %v143 = vunpack.c.h.b16 %v140
      %v144 = vpack.c.b16 %v142, %v142
      %v145 = vpack.c.b16 %v143, %v143
      %vm148 = vcmask 781312
      %149 = vst.msk [vmem:[#allocation8] sm:$0xf] %vm148, %v144
      %150 = vst.msk [vmem:[#allocation8 + $0x4] sm:$0xf] %vm148, %v145
    $region29: #{tpu_custom_call.1} parent=1 // pred_fallthru
      _
    // Predicated region
    $region30: #{tpu_custom_call.1} parent=1 // pred_check
      _
    $region31: #{tpu_custom_call.1} parent=1 // pred_check_branch
      %152 = sbr.rel (0) target = $region33
    $region32: #{tpu_custom_call.1} parent=1 // pred_region
      %s154 = ssub.s32 128, 128
      %155 = vsyncadd [#allocation5], %s154
      %s156 = sshll.u32 [#allocation8], 4
      %s157 = int_to_ptr.vmem [resolvable:$true] %s156
      %162 = dma.vmem_to_hbm [thread:$0]  %s157, 128, %s3, [#allocation5], 64, 64, 4
    $region33: #{tpu_custom_call.1} parent=1 // pred_fallthru
      _
    // Predicated region
    $region34: #{tpu_custom_call.1} parent=1 // pred_check
      _
    $region35: #{tpu_custom_call.1} parent=1 // pred_check_branch
      %164 = sbr.rel (0) target = $region37
    $region36: #{tpu_custom_call.1} parent=1 // pred_region
      %165 = dma.done [#allocation5], 128
    $region37: #{tpu_custom_call.1} parent=1 // pred_fallthru
      _
    %166 = vsyncpa [#allocation4], 1
    %167 = vsyncpa [#allocation7], 1
    %168 = vsyncpa [#allocation5], 1

</llo_original>
